<compile_context>
chip_gen: v6e
topology: v6e:2x2x1
jax: 0.10.0
libtpu: 0.0.40
codegen_flags: <defaults>
</compile_context>

<pallas_src>
import functools
import math

import jax
import jax.numpy as jnp
from jax.experimental import pallas as pl
from jax.experimental.pallas import tpu as pltpu

SPLITS = (3,) * 5 + (2,) * 3        # default splits from SplitLayer.__init__
DEFAULT_ROW_TILE = 8192             # lanes per grid step; sweep 2048..32768


def _split_offsets(splits):
    offs, off = [], 0
    for s in splits:
        offs.append(off)
        off += s
    return tuple(offs)


def _split_kernel(x_ref, *out_refs, offsets, sizes):
    # x_ref is an (F, TR) tile: features on sublanes, rows on lanes.
    # Each output is a static sublane-slice of that tile; static slices are
    # zero-cost ref views, and each store writes a full-lane (s, TR) slab.
    for o_ref, off, s in zip(out_refs, offsets, sizes):
        o_ref[...] = x_ref[off:off + s, :]


def split_layer(x, splits=SPLITS, row_tile=DEFAULT_ROW_TILE):
    """Pallas equivalent of SplitLayer.forward (torch.split on dim=-1)."""
    splits = tuple(int(s) for s in splits)
    feat = x.shape[-1]
    assert sum(splits) == feat, f"splits {splits} must sum to last dim {feat}"

    lead = x.shape[:-1]
    rows = math.prod(lead) if lead else 1

    # Lane-major layout: rows -> lanes (long/fast axis), features -> sublanes.
    xt = jnp.transpose(x.reshape(rows, feat))           # (F, rows)

    # Row tile: large multiple of 128 for unmasked lane-dense stores; fall
    # back to the full extent when the array is smaller than one tile.
    tr = row_tile if rows >= row_tile else rows
    grid = (pl.cdiv(rows, tr),)

    kernel = functools.partial(
        _split_kernel, offsets=_split_offsets(splits), sizes=splits)

    out_shapes = tuple(
        jax.ShapeDtypeStruct((s, rows), x.dtype) for s in splits)
    in_specs = [pl.BlockSpec((feat, tr), lambda i: (0, i))]
    out_specs = tuple(
        pl.BlockSpec((s, tr), lambda i: (0, i)) for s in splits)

    bytes_accessed = 2 * x.size * x.dtype.itemsize      # 1 read + 1 write
    outs_t = pl.pallas_call(
        kernel,
        out_shape=out_shapes,
        grid=grid,
        in_specs=in_specs,
        out_specs=out_specs,
        compiler_params=pltpu.CompilerParams(
            dimension_semantics=("parallel",)),
        cost_estimate=pl.CostEstimate(
            flops=0, transcendentals=0, bytes_accessed=bytes_accessed),
    )(xt)

    # Back to the PyTorch layout: (s, rows) -> (*lead, s).
    return tuple(
        jnp.transpose(o).reshape(lead + (s,)) for o, s in zip(outs_t, splits))


def _check(x, splits, outs):
    off = 0
    ok = True
    for o, s in zip(outs, splits):
        ref = x[..., off:off + s]
        ok &= bool(jnp.array_equal(o, ref))
        ok &= (o.shape == x.shape[:-1] + (s,)) and (o.dtype == x.dtype)
        off += s
    return ok


if __name__ == "__main__":
    key = jax.random.PRNGKey(0)
    k1, k2 = jax.random.split(key)

    # Small shape matching the module's dim=-1 convention.
    B, S, F = 2, 8, sum(SPLITS)                        # F = 21
    x = jax.random.normal(k1, (B, S, F), dtype=jnp.float32)
    outs = jax.block_until_ready(split_layer(x))
    assert _check(x, SPLITS, outs), "default-splits outputs mismatch reference"

    # Non-default splits (exercises splits threading into the kernel).
    alt_splits = (7, 7, 7)
    outs_alt = jax.block_until_ready(split_layer(x, splits=alt_splits))
    assert _check(x, alt_splits, outs_alt), "custom-splits outputs mismatch"

    # Larger row count with a small tile to exercise the multi-step,
    # double-buffered grid path (rows = 1024, tile = 256 -> grid=(4,)).
    xb = jax.random.normal(k2, (8, 128, F), dtype=jnp.float32)
    outs_big = jax.block_until_ready(split_layer(xb, row_tile=256))
    assert _check(xb, SPLITS, outs_big), "tiled-grid outputs mismatch"

    print("KERNEL_OK")
</pallas_src>

<mosaic_0001>
module attributes {stable_mosaic.version = 11 : i64} {
  func.func @_split_kernel(%arg0: i32, %arg1: memref<21x16xf32, #tpu.memory_space<vmem>>, %arg2: memref<3x16xf32, #tpu.memory_space<vmem>>, %arg3: memref<3x16xf32, #tpu.memory_space<vmem>>, %arg4: memref<3x16xf32, #tpu.memory_space<vmem>>, %arg5: memref<3x16xf32, #tpu.memory_space<vmem>>, %arg6: memref<3x16xf32, #tpu.memory_space<vmem>>, %arg7: memref<2x16xf32, #tpu.memory_space<vmem>>, %arg8: memref<2x16xf32, #tpu.memory_space<vmem>>, %arg9: memref<2x16xf32, #tpu.memory_space<vmem>>) attributes {dimension_semantics = [#tpu.dimension_semantics<parallel>], iteration_bounds = array<i64: 1>, scalar_prefetch = 0 : i64, scratch_operands = 0 : i64, tpu.core_type = #tpu.core_type<tc>, window_params = [{transform_indices = @transform_0, window_bounds = array<i64: 21, 16>}, {transform_indices = @transform_1, window_bounds = array<i64: 3, 16>}, {transform_indices = @transform_2, window_bounds = array<i64: 3, 16>}, {transform_indices = @transform_3, window_bounds = array<i64: 3, 16>}, {transform_indices = @transform_4, window_bounds = array<i64: 3, 16>}, {transform_indices = @transform_5, window_bounds = array<i64: 3, 16>}, {transform_indices = @transform_6, window_bounds = array<i64: 2, 16>}, {transform_indices = @transform_7, window_bounds = array<i64: 2, 16>}, {transform_indices = @transform_8, window_bounds = array<i64: 2, 16>}]} {
    %c0 = arith.constant 0 : index
    %c0_0 = arith.constant 0 : index
    %0 = vector.load %arg1[%c0, %c0_0] : memref<21x16xf32, #tpu.memory_space<vmem>>, vector<3x16xf32>
    %c0_1 = arith.constant 0 : index
    %c0_2 = arith.constant 0 : index
    %1 = vector.load %arg2[%c0_1, %c0_2] : memref<3x16xf32, #tpu.memory_space<vmem>>, vector<3x16xf32>
    tpu.vector_store %arg2[%c0_1, %c0_2], %0 {strides = array<i32>} : memref<3x16xf32, #tpu.memory_space<vmem>>, vector<3x16xf32>,
    %c3 = arith.constant 3 : index
    %c0_3 = arith.constant 0 : index
    %2 = vector.load %arg1[%c3, %c0_3] : memref<21x16xf32, #tpu.memory_space<vmem>>, vector<3x16xf32>
    %c0_4 = arith.constant 0 : index
    %c0_5 = arith.constant 0 : index
    %3 = vector.load %arg3[%c0_4, %c0_5] : memref<3x16xf32, #tpu.memory_space<vmem>>, vector<3x16xf32>
    tpu.vector_store %arg3[%c0_4, %c0_5], %2 {strides = array<i32>} : memref<3x16xf32, #tpu.memory_space<vmem>>, vector<3x16xf32>,
    %c6 = arith.constant 6 : index
    %c0_6 = arith.constant 0 : index
    %4 = vector.load %arg1[%c6, %c0_6] : memref<21x16xf32, #tpu.memory_space<vmem>>, vector<3x16xf32>
    %c0_7 = arith.constant 0 : index
    %c0_8 = arith.constant 0 : index
    %5 = vector.load %arg4[%c0_7, %c0_8] : memref<3x16xf32, #tpu.memory_space<vmem>>, vector<3x16xf32>
    tpu.vector_store %arg4[%c0_7, %c0_8], %4 {strides = array<i32>} : memref<3x16xf32, #tpu.memory_space<vmem>>, vector<3x16xf32>,
    %c9 = arith.constant 9 : index
    %c0_9 = arith.constant 0 : index
    %6 = vector.load %arg1[%c9, %c0_9] : memref<21x16xf32, #tpu.memory_space<vmem>>, vector<3x16xf32>
    %c0_10 = arith.constant 0 : index
    %c0_11 = arith.constant 0 : index
    %7 = vector.load %arg5[%c0_10, %c0_11] : memref<3x16xf32, #tpu.memory_space<vmem>>, vector<3x16xf32>
    tpu.vector_store %arg5[%c0_10, %c0_11], %6 {strides = array<i32>} : memref<3x16xf32, #tpu.memory_space<vmem>>, vector<3x16xf32>,
    %c12 = arith.constant 12 : index
    %c0_12 = arith.constant 0 : index
    %8 = vector.load %arg1[%c12, %c0_12] : memref<21x16xf32, #tpu.memory_space<vmem>>, vector<3x16xf32>
    %c0_13 = arith.constant 0 : index
    %c0_14 = arith.constant 0 : index
    %9 = vector.load %arg6[%c0_13, %c0_14] : memref<3x16xf32, #tpu.memory_space<vmem>>, vector<3x16xf32>
    tpu.vector_store %arg6[%c0_13, %c0_14], %8 {strides = array<i32>} : memref<3x16xf32, #tpu.memory_space<vmem>>, vector<3x16xf32>,
    %c15 = arith.constant 15 : index
    %c0_15 = arith.constant 0 : index
    %10 = vector.load %arg1[%c15, %c0_15] : memref<21x16xf32, #tpu.memory_space<vmem>>, vector<2x16xf32>
    %c0_16 = arith.constant 0 : index
    %c0_17 = arith.constant 0 : index
    %11 = vector.load %arg7[%c0_16, %c0_17] : memref<2x16xf32, #tpu.memory_space<vmem>>, vector<2x16xf32>
    tpu.vector_store %arg7[%c0_16, %c0_17], %10 {strides = array<i32>} : memref<2x16xf32, #tpu.memory_space<vmem>>, vector<2x16xf32>,
    %c17 = arith.constant 17 : index
    %c0_18 = arith.constant 0 : index
    %12 = vector.load %arg1[%c17, %c0_18] : memref<21x16xf32, #tpu.memory_space<vmem>>, vector<2x16xf32>
    %c0_19 = arith.constant 0 : index
    %c0_20 = arith.constant 0 : index
    %13 = vector.load %arg8[%c0_19, %c0_20] : memref<2x16xf32, #tpu.memory_space<vmem>>, vector<2x16xf32>
    tpu.vector_store %arg8[%c0_19, %c0_20], %12 {strides = array<i32>} : memref<2x16xf32, #tpu.memory_space<vmem>>, vector<2x16xf32>,
    %c19 = arith.constant 19 : index
    %c0_21 = arith.constant 0 : index
    %14 = vector.load %arg1[%c19, %c0_21] : memref<21x16xf32, #tpu.memory_space<vmem>>, vector<2x16xf32>
    %c0_22 = arith.constant 0 : index
    %c0_23 = arith.constant 0 : index
    %15 = vector.load %arg9[%c0_22, %c0_23] : memref<2x16xf32, #tpu.memory_space<vmem>>, vector<2x16xf32>
    tpu.vector_store %arg9[%c0_22, %c0_23], %14 {strides = array<i32>} : memref<2x16xf32, #tpu.memory_space<vmem>>, vector<2x16xf32>,
    return
  }
  func.func @transform_0(%arg0: i32) -> (i32, i32) {
    %c0_i32 = arith.constant 0 : i32
    %c0_i32_0 = arith.constant 0 : i32
    return %c0_i32, %arg0 : i32, i32
  }
  func.func @transform_1(%arg0: i32) -> (i32, i32) {
    %c0_i32 = arith.constant 0 : i32
    %c0_i32_0 = arith.constant 0 : i32
    return %c0_i32, %arg0 : i32, i32
  }
  func.func @transform_2(%arg0: i32) -> (i32, i32) {
    %c0_i32 = arith.constant 0 : i32
    %c0_i32_0 = arith.constant 0 : i32
    return %c0_i32, %arg0 : i32, i32
  }
  func.func @transform_3(%arg0: i32) -> (i32, i32) {
    %c0_i32 = arith.constant 0 : i32
    %c0_i32_0 = arith.constant 0 : i32
    return %c0_i32, %arg0 : i32, i32
  }
  func.func @transform_4(%arg0: i32) -> (i32, i32) {
    %c0_i32 = arith.constant 0 : i32
    %c0_i32_0 = arith.constant 0 : i32
    return %c0_i32, %arg0 : i32, i32
  }
  func.func @transform_5(%arg0: i32) -> (i32, i32) {
    %c0_i32 = arith.constant 0 : i32
    %c0_i32_0 = arith.constant 0 : i32
    return %c0_i32, %arg0 : i32, i32
  }
  func.func @transform_6(%arg0: i32) -> (i32, i32) {
    %c0_i32 = arith.constant 0 : i32
    %c0_i32_0 = arith.constant 0 : i32
    return %c0_i32, %arg0 : i32, i32
  }
  func.func @transform_7(%arg0: i32) -> (i32, i32) {
    %c0_i32 = arith.constant 0 : i32
    %c0_i32_0 = arith.constant 0 : i32
    return %c0_i32, %arg0 : i32, i32
  }
  func.func @transform_8(%arg0: i32) -> (i32, i32) {
    %c0_i32 = arith.constant 0 : i32
    %c0_i32_0 = arith.constant 0 : i32
    return %c0_i32, %arg0 : i32, i32
  }
}

</mosaic_0001>

<llo_original>
// kernel: tpu_custom_call.1
$region0: #{tpu_custom_call.1}
  #allocation0 [shape = 'u32[]', space=smem, size = 0x4, offset = 0x4, fixed_abs, tag = 'smem constant byte address 0x4 - core index']
  #allocation1 [shape = 'u32[144,128]{1,0:T(1,128)}', space=vmem, size = 0x12000, scoped, tag = 'internal scratch']
  %s0 = inlined_call_operand.vmem [shape: f32[21,16], index: 0, kind: input, shape index: {}]
  %s1 = inlined_call_operand.hbm [shape: f32[3,16], index: 1, kind: output, shape index: {0}]
  %s2 = inlined_call_operand.hbm [shape: f32[3,16], index: 2, kind: output, shape index: {1}]
  %s3 = inlined_call_operand.hbm [shape: f32[3,16], index: 3, kind: output, shape index: {2}]
  %s4 = inlined_call_operand.hbm [shape: f32[3,16], index: 4, kind: output, shape index: {3}]
  %s5 = inlined_call_operand.hbm [shape: f32[3,16], index: 5, kind: output, shape index: {4}]
  %s6 = inlined_call_operand.hbm [shape: f32[2,16], index: 6, kind: output, shape index: {5}]
  %s7 = inlined_call_operand.hbm [shape: f32[2,16], index: 7, kind: output, shape index: {6}]
  %s8 = inlined_call_operand.hbm [shape: f32[2,16], index: 8, kind: output, shape index: {7}]
  %9 = xla_tuple %s1, %s2, %s3, %s4, %s5, %s6, %s7, %s8
  %s10 = sld [smem:[#allocation0]]
  $region70: #{tpu_custom_call.1} parent=0
    _
  %s12 = ssub.s32 1, %s10
  %s13 = scalar_select 0, %s12, %s10
  $region1: #{tpu_custom_call.1} parent=0
    #allocation2 [shape = 'u8[2048]{0}', space=vmem, size = 0x800, scoped, tag = 'output window, operand 0, single buffered']
    #allocation3 [shape = 's32[1]{0}', space=sflag, size = 0x4, scoped, tag = 'scoped memory for tpu_custom_call.1']
    #allocation4 [shape = 'u8[2048]{0}', space=vmem, size = 0x800, scoped, tag = 'output window, operand 1, single buffered']
    #allocation5 [shape = 's32[1]{0}', space=sflag, size = 0x4, scoped, tag = 'scoped memory for tpu_custom_call.1']
    #allocation6 [shape = 'u8[2048]{0}', space=vmem, size = 0x800, scoped, tag = 'output window, operand 2, single buffered']
    #allocation7 [shape = 'u8[2048]{0}', space=vmem, size = 0x800, scoped, tag = 'output window, operand 3, single buffered']
    #allocation8 [shape = 's32[1]{0}', space=sflag, size = 0x4, scoped, tag = 'scoped memory for tpu_custom_call.1']
    #allocation9 [shape = 'u8[2048]{0}', space=vmem, size = 0x800, scoped, tag = 'output window, operand 4, single buffered']
    #allocation10 [shape = 'u8[1024]{0}', space=vmem, size = 0x400, scoped, tag = 'output window, operand 5, single buffered']
    #allocation11 [shape = 's32[1]{0}', space=sflag, size = 0x4, scoped, tag = 'scoped memory for tpu_custom_call.1']
    #allocation12 [shape = 'u8[1024]{0}', space=vmem, size = 0x400, scoped, tag = 'output window, operand 6, single buffered']
    #allocation13 [shape = 'u8[1024]{0}', space=vmem, size = 0x400, scoped, tag = 'output window, operand 7, single buffered']
    #allocation14 [shape = 's32[1]{0}', space=sflag, size = 0x4, scoped, tag = 'scoped memory for tpu_custom_call.1']
    %14 = vsyncpa [#allocation3], 0
    %15 = vsyncpa [#allocation5], 0
    %16 = vsyncpa [#allocation8], 0
    %17 = vsyncpa [#allocation11], 0
    %18 = vsyncpa [#allocation14], 0
    // Predicated region
    $region2: #{tpu_custom_call.1} parent=1 // pred_check
      _
    $region3: #{tpu_custom_call.1} parent=1 // pred_check_branch
      %20 = sbr.rel (0) target = $region5
    $region4: #{tpu_custom_call.1} parent=1 // pred_region
      _
    $region5: #{tpu_custom_call.1} parent=1 // pred_fallthru
      _
    %v21 = vld [vmem:[%s0] sm:$0x7]
    %vm22 = vcmask 124928
    %23 = vst.msk [vmem:[#allocation2] sm:$0x7] %vm22, %v21
    %v24 = vld [vmem:[%s0 + $0x3] sm:$0x7]
    %25 = vst.msk [vmem:[#allocation4] sm:$0x7] %vm22, %v24
    %v26 = vld [vmem:[%s0 + $0x6] sm:$0x7]
    %27 = vst.msk [vmem:[#allocation6] sm:$0x7] %vm22, %v26
    %v28 = vld [vmem:[%s0 + $0x9] sm:$0x7]
    %29 = vst.msk [vmem:[#allocation7] sm:$0x7] %vm22, %v28
    %v30 = vld [vmem:[%s0 + $0xc] sm:$0x7]
    %31 = vst.msk [vmem:[#allocation9] sm:$0x7] %vm22, %v30
    %v32 = vld [vmem:[%s0 + $0xf] sm:$0x3]
    %vm33 = vcmask 123904
    %34 = vst.msk [vmem:[#allocation10] sm:$0x3] %vm33, %v32
    %v35 = vld [vmem:[%s0 + $0x11] sm:$0x3]
    %36 = vst.msk [vmem:[#allocation12] sm:$0x3] %vm33, %v35
    %v37 = vld [vmem:[%s0 + $0x13] sm:$0x3]
    %38 = vst.msk [vmem:[#allocation13] sm:$0x3] %vm33, %v37
    // Predicated region
    $region6: #{tpu_custom_call.1} parent=1 // pred_check
      _
    $region7: #{tpu_custom_call.1} parent=1 // pred_check_branch
      %40 = sbr.rel (0) target = $region9
    $region8: #{tpu_custom_call.1} parent=1 // pred_region
      %s42 = ssub.s32 64, 64
      %43 = vsyncadd [#allocation3], %s42
      %s45 = sshll.u32 [#allocation2], 4
      %s46 = int_to_ptr.vmem [resolvable:$true] %s45
      %48 = dma.vmem_to_hbm [thread:$0]  %s46, 64, %s1, [#allocation3]
    $region9: #{tpu_custom_call.1} parent=1 // pred_fallthru
      _
    // Predicated region
    $region10: #{tpu_custom_call.1} parent=1 // pred_check
      _
    $region11: #{tpu_custom_call.1} parent=1 // pred_check_branch
      %50 = sbr.rel (0) target = $region13
    $region12: #{tpu_custom_call.1} parent=1 // pred_region
      %s52 = ssub.s32 64, 64
      %53 = vsyncadd [#allocation5], %s52
      %s55 = sshll.u32 [#allocation4], 4
      %s56 = int_to_ptr.vmem [resolvable:$true] %s55
      %58 = dma.vmem_to_hbm [thread:$0]  %s56, 64, %s2, [#allocation5]
    $region13: #{tpu_custom_call.1} parent=1 // pred_fallthru
      _
    // Predicated region
    $region14: #{tpu_custom_call.1} parent=1 // pred_check
      _
    $region15: #{tpu_custom_call.1} parent=1 // pred_check_branch
      %60 = sbr.rel (0) target = $region17
    $region16: #{tpu_custom_call.1} parent=1 // pred_region
      %s62 = ssub.s32 64, 64
      %63 = vsyncadd [#allocation5], %s62
      %s65 = sshll.u32 [#allocation6], 4
      %s66 = int_to_ptr.vmem [resolvable:$true] %s65
      %68 = dma.vmem_to_hbm [thread:$0]  %s66, 64, %s3, [#allocation5]
    $region17: #{tpu_custom_call.1} parent=1 // pred_fallthru
      _
    // Predicated region
    $region18: #{tpu_custom_call.1} parent=1 // pred_check
      _
    $region19: #{tpu_custom_call.1} parent=1 // pred_check_branch
      %70 = sbr.rel (0) target = $region21
    $region20: #{tpu_custom_call.1} parent=1 // pred_region
      %s72 = ssub.s32 64, 64
      %73 = vsyncadd [#allocation8], %s72
      %s75 = sshll.u32 [#allocation7], 4
      %s76 = int_to_ptr.vmem [resolvable:$true] %s75
      %78 = dma.vmem_to_hbm [thread:$0]  %s76, 64, %s4, [#allocation8]
    $region21: #{tpu_custom_call.1} parent=1 // pred_fallthru
      _
    // Predicated region
    $region22: #{tpu_custom_call.1} parent=1 // pred_check
      _
    $region23: #{tpu_custom_call.1} parent=1 // pred_check_branch
      %80 = sbr.rel (0) target = $region25
    $region24: #{tpu_custom_call.1} parent=1 // pred_region
      %s82 = ssub.s32 64, 64
      %83 = vsyncadd [#allocation8], %s82
      %s85 = sshll.u32 [#allocation9], 4
      %s86 = int_to_ptr.vmem [resolvable:$true] %s85
      %88 = dma.vmem_to_hbm [thread:$0]  %s86, 64, %s5, [#allocation8]
    $region25: #{tpu_custom_call.1} parent=1 // pred_fallthru
      _
    // Predicated region
    $region26: #{tpu_custom_call.1} parent=1 // pred_check
      _
    $region27: #{tpu_custom_call.1} parent=1 // pred_check_branch
      %90 = sbr.rel (0) target = $region29
    $region28: #{tpu_custom_call.1} parent=1 // pred_region
      %s92 = ssub.s32 32, 32
      %93 = vsyncadd [#allocation11], %s92
      %s95 = sshll.u32 [#allocation10], 4
      %s96 = int_to_ptr.vmem [resolvable:$true] %s95
      %98 = dma.vmem_to_hbm [thread:$0]  %s96, 32, %s6, [#allocation11]
    $region29: #{tpu_custom_call.1} parent=1 // pred_fallthru
      _
    // Predicated region
    $region30: #{tpu_custom_call.1} parent=1 // pred_check
      _
    $region31: #{tpu_custom_call.1} parent=1 // pred_check_branch
      %100 = sbr.rel (0) target = $region33
    $region32: #{tpu_custom_call.1} parent=1 // pred_region
      %s102 = ssub.s32 32, 32
      %103 = vsyncadd [#allocation11], %s102
      %s105 = sshll.u32 [#allocation12], 4
      %s106 = int_to_ptr.vmem [resolvable:$true] %s105
      %108 = dma.vmem_to_hbm [thread:$0]  %s106, 32, %s7, [#allocation11]
    $region33: #{tpu_custom_call.1} parent=1 // pred_fallthru
      _
    // Predicated region
    $region34: #{tpu_custom_call.1} parent=1 // pred_check
      _
    $region35: #{tpu_custom_call.1} parent=1 // pred_check_branch
      %110 = sbr.rel (0) target = $region37
    $region36: #{tpu_custom_call.1} parent=1 // pred_region
      %s112 = ssub.s32 32, 32
      %113 = vsyncadd [#allocation14], %s112
      %s115 = sshll.u32 [#allocation13], 4
      %s116 = int_to_ptr.vmem [resolvable:$true] %s115
      %118 = dma.vmem_to_hbm [thread:$0]  %s116, 32, %s8, [#allocation14]
    $region37: #{tpu_custom_call.1} parent=1 // pred_fallthru
      _
    // Predicated region
    $region38: #{tpu_custom_call.1} parent=1 // pred_check
      _
    $region39: #{tpu_custom_call.1} parent=1 // pred_check_branch
      %120 = sbr.rel (0) target = $region41
    $region40: #{tpu_custom_call.1} parent=1 // pred_region
      %121 = dma.done [#allocation3], 64
    $region41: #{tpu_custom_call.1} parent=1 // pred_fallthru
      _
    // Predicated region
    $region42: #{tpu_custom_call.1} parent=1 // pred_check
      _
    $region43: #{tpu_custom_call.1} parent=1 // pred_check_branch
      %123 = sbr.rel (0) target = $region45
    $region44: #{tpu_custom_call.1} parent=1 // pred_region
      %124 = dma.done [#allocation5], 64
    $region45: #{tpu_custom_call.1} parent=1 // pred_fallthru
      _
    // Predicated region
    $region46: #{tpu_custom_call.1} parent=1 // pred_check
      _
    $region47: #{tpu_custom_call.1} parent=1 // pred_check_branch
      %126 = sbr.rel (0) target = $region49
    $region48: #{tpu_custom_call.1} parent=1 // pred_region
      %127 = dma.done [#allocation5], 64
    $region49: #{tpu_custom_call.1} parent=1 // pred_fallthru
      _
    // Predicated region
    $region50: #{tpu_custom_call.1} parent=1 // pred_check
      _
    $region51: #{tpu_custom_call.1} parent=1 // pred_check_branch
      %129 = sbr.rel (0) target = $region53
    $region52: #{tpu_custom_call.1} parent=1 // pred_region
      %130 = dma.done [#allocation8], 64
    $region53: #{tpu_custom_call.1} parent=1 // pred_fallthru
      _
    // Predicated region
    $region54: #{tpu_custom_call.1} parent=1 // pred_check
      _
    $region55: #{tpu_custom_call.1} parent=1 // pred_check_branch
      %132 = sbr.rel (0) target = $region57
    $region56: #{tpu_custom_call.1} parent=1 // pred_region
      %133 = dma.done [#allocation8], 64
    $region57: #{tpu_custom_call.1} parent=1 // pred_fallthru
      _
    // Predicated region
    $region58: #{tpu_custom_call.1} parent=1 // pred_check
      _
    $region59: #{tpu_custom_call.1} parent=1 // pred_check_branch
      %135 = sbr.rel (0) target = $region61
    $region60: #{tpu_custom_call.1} parent=1 // pred_region
      %136 = dma.done [#allocation11], 32
    $region61: #{tpu_custom_call.1} parent=1 // pred_fallthru
      _
    // Predicated region
    $region62: #{tpu_custom_call.1} parent=1 // pred_check
      _
    $region63: #{tpu_custom_call.1} parent=1 // pred_check_branch
      %138 = sbr.rel (0) target = $region65
    $region64: #{tpu_custom_call.1} parent=1 // pred_region
      %139 = dma.done [#allocation11], 32
    $region65: #{tpu_custom_call.1} parent=1 // pred_fallthru
      _
    // Predicated region
    $region66: #{tpu_custom_call.1} parent=1 // pred_check
      _
    $region67: #{tpu_custom_call.1} parent=1 // pred_check_branch
      %141 = sbr.rel (0) target = $region69
    $region68: #{tpu_custom_call.1} parent=1 // pred_region
      %142 = dma.done [#allocation14], 32
    $region69: #{tpu_custom_call.1} parent=1 // pred_fallthru
      _
    %143 = vsyncpa [#allocation3], 1
    %144 = vsyncpa [#allocation5], 1
    %145 = vsyncpa [#allocation8], 1
    %146 = vsyncpa [#allocation11], 1
    %147 = vsyncpa [#allocation14], 1

</llo_original>
